<compile_context>
chip_gen: v5e
topology: v5e:2x2
jax: 0.10.0
libtpu: 0.0.40
codegen_flags: <defaults>
</compile_context>

<pallas_src>
import functools

import jax
import jax.numpy as jnp
from jax.experimental import pallas as pl
from jax.experimental.pallas import tpu as pltpu


def _cdiv(a, b):
    return -(-a // b)


def _round_up(a, m):
    return _cdiv(a, m) * m


# --------------------------------------------------------------------------
# Kernels
# --------------------------------------------------------------------------
def _cab_fused_kernel(gamma_ref, x_ref, o_ref):
    # gamma_ref: (1,) f32 in SMEM; x_ref / o_ref: (bb, C, N) VMEM blocks.
    x = x_ref[...]                                    # input dtype, no upcast

    # affinity = Q @ K^T: contract the spatial axis of both operands so the
    # transpose is folded into the MXU contraction (f32 accumulation).
    aff = jnp.einsum("bcn,bdn->bcd", x, x,
                     preferred_element_type=jnp.float32)        # (bb, C, C)

    # softmax(rowmax(aff) - aff) == exp(rowmin(aff) - aff) / sum(...)
    row_min = jnp.min(aff, axis=-1, keepdims=True)
    e = jnp.exp(row_min - aff)
    p = e / jnp.sum(e, axis=-1, keepdims=True)        # exact divide

    # Fold gamma into the small (C, C) matrix instead of scaling (C, N).
    pg = (gamma_ref[0] * p).astype(x.dtype)
    w = jnp.einsum("bcd,bdn->bcn", pg, x,
                   preferred_element_type=jnp.float32)          # (bb, C, N)

    # Residual add in f32, single downcast at the end.
    o_ref[...] = (w + x.astype(jnp.float32)).astype(o_ref.dtype)


def _cab_affinity_kernel(gamma_ref, x_ref, p_ref, acc_ref, *, n_total, tile_n):
    # Pass 1 of the N-tiled path: accumulate aff = x @ x^T over N tiles, then
    # emit gamma * softmax(rowmax(aff) - aff) on the last tile.
    n = pl.program_id(1)

    @pl.when(n == 0)
    def _():
        acc_ref[...] = jnp.zeros_like(acc_ref)

    x = x_ref[...]                                    # (1, C, tile_n)
    if n_total % tile_n != 0:
        # Mask the out-of-bounds tail of the last N tile: N is a contraction
        # axis here, so OOB garbage would contaminate the affinity.
        col = jax.lax.broadcasted_iota(jnp.int32, x.shape, 2)
        valid = n_total - n * tile_n
        x = jnp.where(col < valid, x, jnp.zeros_like(x))

    acc_ref[...] += jnp.einsum("bcn,bdn->bcd", x, x,
                               preferred_element_type=jnp.float32)

    @pl.when(n == pl.num_programs(1) - 1)
    def _():
        aff = acc_ref[...]
        row_min = jnp.min(aff, axis=-1, keepdims=True)
        e = jnp.exp(row_min - aff)
        p = e / jnp.sum(e, axis=-1, keepdims=True)
        p_ref[...] = (gamma_ref[0] * p).astype(p_ref.dtype)


def _cab_apply_kernel(p_ref, x_ref, o_ref):
    # Pass 2 of the N-tiled path: out = P @ V + x on one N tile.
    x = x_ref[...]
    w = jnp.einsum("bcd,bdn->bcn", p_ref[...], x,
                   preferred_element_type=jnp.float32)
    o_ref[...] = (w + x.astype(jnp.float32)).astype(o_ref.dtype)


# --------------------------------------------------------------------------
# Wrapper
# --------------------------------------------------------------------------
def _vmem_capacity_bytes():
    try:
        return int(pltpu.get_tpu_info().vmem_capacity_bytes)
    except Exception:
        return 64 << 20    # conservative fallback: v7x has 64 MiB / TensorCore


def channel_attention_block(x, gamma, *, n_tile=None):
    """x: (B, C, H, W); gamma: scalar parameter (shape (1,) or ()).

    n_tile: optional override that forces the N-tiled two-pass path (mainly
    for testing); by default it is used only when the fused path cannot fit
    VMEM.
    """
    B, C, H, W = x.shape
    N = H * W
    x_flat = x.reshape(B, C, N)            # free reshape, no pad/slice copies
    gamma_s = jnp.asarray(gamma, dtype=jnp.float32).reshape(1)
    itemsize = jnp.dtype(x.dtype).itemsize

    # ---- generation-aware budgets ------------------------------------------
    vmem_cap = _vmem_capacity_bytes()                  # 128 MiB v5e/v6e, 64 MiB v7x
    max_vmem_limit = max(vmem_cap - (8 << 20), 16 << 20)   # never exceed the chip
    block_budget = (8 << 20) if vmem_cap >= (96 << 20) else (4 << 20)

    # Physical (padded) footprints: C pads to the sublane quantum, the last
    # dim to a 128-lane multiple; f32 intermediates pad C to 8.
    sub = max(8, 32 // itemsize)                       # f32: 8, bf16: 16, int8: 32
    c_sub = _round_up(C, sub)
    c8 = _round_up(C, 8)
    c_lane = _round_up(C, 128)
    n_lane = _round_up(N, 128)

    x_blk_bytes = c_sub * n_lane * itemsize            # one batch element's x block
    aff_bytes = c8 * c_lane * 4                        # one batch element's (C,C) f32

    def fused_need(bb):
        # double-buffered in + out blocks, f32 w, ~4 (C,C) f32 temporaries
        return 4 * bb * x_blk_bytes + bb * c8 * n_lane * 4 + 4 * bb * aff_bytes

    use_tiled = (n_tile is not None) or fused_need(1) > max_vmem_limit

    if not use_tiled:
        # ---------------- fused single-pass path ----------------
        bb = 1
        for cand in range(2, B + 1):
            if (cand * x_blk_bytes > block_budget
                    or fused_need(cand) > max_vmem_limit):
                break
            bb = cand
        if B >= 2:
            # Keep >= 2 grid steps: feeds both v7x TensorCores and lets the
            # pipeline overlap DMA with compute on single-core chips.
            bb = min(bb, _cdiv(B, 2))
        grid_b = _cdiv(B, bb)        # tail block (if bb does not divide B) is masked

        vmem_limit = min(max(2 * fused_need(bb), 32 << 20), max_vmem_limit)

        out_flat = pl.pallas_call(
            _cab_fused_kernel,
            out_shape=jax.ShapeDtypeStruct((B, C, N), x.dtype),
            grid_spec=pltpu.PrefetchScalarGridSpec(
                num_scalar_prefetch=0,
                grid=(grid_b,),
                in_specs=[
                    # gamma: tiny loop-invariant scalar kept in SMEM
                    pl.BlockSpec(memory_space=pltpu.MemorySpace.SMEM),
                    pl.BlockSpec((bb, C, N), lambda b: (b, 0, 0)),
                ],
                out_specs=pl.BlockSpec((bb, C, N), lambda b: (b, 0, 0)),
            ),
            compiler_params=pltpu.CompilerParams(
                dimension_semantics=("parallel",),
                vmem_limit_bytes=vmem_limit,
            ),
        )(gamma_s, x_flat)
        return out_flat.reshape(B, C, H, W)

    # ---------------- N-tiled two-pass path (large C*N) ----------------
    # One batch element per step; pick the largest 128-multiple N tile that
    # fits both the per-block budget and the scoped-VMEM limit.
    per_col = 4 * c_sub * itemsize + 4 * c8            # in/out tiles (x2 buf) + f32 w
    fixed = 2 * c_sub * c_lane * itemsize + 4 * aff_bytes
    tn_fit = (max_vmem_limit - fixed) // per_col if max_vmem_limit > fixed else 128
    tn_budget = block_budget // (c_sub * itemsize)
    tn = min(n_lane, tn_fit, tn_budget)
    if n_tile is not None:
        tn = min(tn, _round_up(n_tile, 128))
    tn = max(128, (tn // 128) * 128)
    # TODO(synk): if C is so large that the (C, C) affinity itself overflows
    # VMEM, the channel axis also needs tiling (flash-style softmax).

    n_tiles = _cdiv(N, tn)
    vmem_limit = min(max(2 * (fixed + per_col * tn), 32 << 20), max_vmem_limit)

    p = pl.pallas_call(
        functools.partial(_cab_affinity_kernel, n_total=N, tile_n=tn),
        out_shape=jax.ShapeDtypeStruct((B, C, C), x.dtype),
        grid_spec=pltpu.PrefetchScalarGridSpec(
            num_scalar_prefetch=0,
            grid=(B, n_tiles),
            in_specs=[
                pl.BlockSpec(memory_space=pltpu.MemorySpace.SMEM),      # gamma
                pl.BlockSpec((1, C, tn), lambda b, n: (b, 0, n)),
            ],
            out_specs=pl.BlockSpec((1, C, C), lambda b, n: (b, 0, 0)),
            scratch_shapes=[pltpu.VMEM((1, C, C), jnp.float32)],
        ),
        compiler_params=pltpu.CompilerParams(
            dimension_semantics=("parallel", "arbitrary"),
            vmem_limit_bytes=vmem_limit,
        ),
    )(gamma_s, x_flat)

    out_flat = pl.pallas_call(
        _cab_apply_kernel,
        out_shape=jax.ShapeDtypeStruct((B, C, N), x.dtype),
        grid_spec=pltpu.PrefetchScalarGridSpec(
            num_scalar_prefetch=0,
            grid=(B, n_tiles),
            in_specs=[
                pl.BlockSpec((1, C, C), lambda b, n: (b, 0, 0)),
                pl.BlockSpec((1, C, tn), lambda b, n: (b, 0, n)),
            ],
            out_specs=pl.BlockSpec((1, C, tn), lambda b, n: (b, 0, n)),
        ),
        compiler_params=pltpu.CompilerParams(
            dimension_semantics=("parallel", "parallel"),
            vmem_limit_bytes=vmem_limit,
        ),
    )(p, x_flat)

    return out_flat.reshape(B, C, H, W)


# --------------------------------------------------------------------------
# Reference + test
# --------------------------------------------------------------------------
def _reference(x, gamma):
    B, C, H, W = x.shape
    q = x.reshape(B, C, -1).astype(jnp.float32)
    aff = jnp.einsum("bcn,bdn->bcd", q, q, precision="highest")
    aff_new = jnp.max(aff, axis=-1, keepdims=True) - aff
    p = jax.nn.softmax(aff_new, axis=-1)
    w = jnp.einsum("bcd,bdn->bcn", p, q, precision="highest").reshape(B, C, H, W)
    g = jnp.asarray(gamma, jnp.float32).reshape(())
    return (g * w + x.astype(jnp.float32)).astype(x.dtype)


if __name__ == "__main__":
    key = jax.random.PRNGKey(0)
    k1, k2 = jax.random.split(key)

    # Parameter init per the PyTorch module is gamma = zeros(1); use a nonzero
    # value here so the attention path is actually exercised.
    gamma = jnp.array([0.5], dtype=jnp.float32)

    # 1) primary small shape -> fused single-pass path
    x1 = jax.random.normal(k1, (2, 4, 16, 16), dtype=jnp.float32) * 0.2
    out1 = jax.block_until_ready(channel_attention_block(x1, gamma))
    ref1 = _reference(x1, gamma)
    assert out1.shape == x1.shape
    err1 = jnp.max(jnp.abs(out1 - ref1))
    assert jnp.allclose(out1, ref1, atol=3e-3, rtol=3e-3), f"fused path err {err1}"

    # 2) awkward dims: odd B (cdiv batch tail), C not multiple of 8, N=144 not
    #    a multiple of 128 -- fused path with full-dim blocks, no wrapper pad
    x2 = jax.random.normal(k2, (3, 6, 8, 18), dtype=jnp.float32) * 0.2
    out2 = jax.block_until_ready(channel_attention_block(x2, gamma))
    ref2 = _reference(x2, gamma)
    err2 = jnp.max(jnp.abs(out2 - ref2))
    assert jnp.allclose(out2, ref2, atol=3e-3, rtol=3e-3), f"fused awkward err {err2}"

    # 3) same input, forcing the N-tiled two-pass path (large C*N fallback,
    #    including the masked partial last N tile)
    out3 = jax.block_until_ready(channel_attention_block(x2, gamma, n_tile=128))
    err3 = jnp.max(jnp.abs(out3 - ref2))
    assert jnp.allclose(out3, ref2, atol=3e-3, rtol=3e-3), f"tiled path err {err3}"

    print("KERNEL_OK")
</pallas_src>

<mosaic_0001>
module attributes {stable_mosaic.version = 11 : i64} {
  func.func @_cab_fused_kernel(%arg0: i32, %arg1: memref<1xf32, #tpu.memory_space<smem>>, %arg2: memref<1x4x256xf32, #tpu.memory_space<vmem>>, %arg3: memref<1x4x256xf32, #tpu.memory_space<vmem>>) attributes {dimension_semantics = [#tpu.dimension_semantics<parallel>], iteration_bounds = array<i64: 2>, scalar_prefetch = 0 : i64, scratch_operands = 0 : i64, tpu.core_type = #tpu.core_type<tc>, window_params = [{transform_indices = @transform_0, window_bounds = array<i64: 1>}, {transform_indices = @transform_1, window_bounds = array<i64: 1, 4, 256>}, {transform_indices = @transform_2, window_bounds = array<i64: 1, 4, 256>}]} {
    %c0 = arith.constant 0 : index
    %c0_0 = arith.constant 0 : index
    %c0_1 = arith.constant 0 : index
    %0 = vector.load %arg2[%c0, %c0_0, %c0_1] : memref<1x4x256xf32, #tpu.memory_space<vmem>>, vector<1x4x256xf32>
    "tpu.trace_start"() <{level = 10 : i32, message = "bcn,bdn->bcd"}> : () -> ()
    %cst = arith.constant dense<0.000000e+00> : vector<1x4x4xf32>
    %1 = tpu.matmul %0, %0, %cst {dimension_numbers = #tpu.dot_dimension_numbers<[2], [2], [1], [1], [0, 0, 0, 1, 1, 1], [0], [0]>} : vector<1x4x256xf32>, vector<1x4x256xf32>, vector<1x4x4xf32> -> vector<1x4x4xf32>
    "tpu.trace_stop"() : () -> ()
    %cst_2 = arith.constant dense<0x7F800000> : vector<1x4xf32>
    %2 = vector.multi_reduction <minimumf>, %1, %cst_2 [2] : vector<1x4x4xf32> to vector<1x4xf32>
    %3 = vector.shape_cast %2 : vector<1x4xf32> to vector<1x4x1xf32>
    %4 = vector.broadcast %3 : vector<1x4x1xf32> to vector<1x4x4xf32>
    %5 = arith.subf %4, %1 : vector<1x4x4xf32>
    %6 = math.exp %5 : vector<1x4x4xf32>
    %cst_3 = arith.constant dense<0.000000e+00> : vector<1x4xf32>
    %7 = vector.multi_reduction <add>, %6, %cst_3 [2] : vector<1x4x4xf32> to vector<1x4xf32>
    %8 = vector.shape_cast %7 : vector<1x4xf32> to vector<1x4x1xf32>
    %9 = vector.broadcast %8 : vector<1x4x1xf32> to vector<1x4x4xf32>
    %10 = arith.divf %6, %9 : vector<1x4x4xf32>
    %c0_4 = arith.constant 0 : index
    %11 = memref.load %arg1[%c0_4] : memref<1xf32, #tpu.memory_space<smem>>
    %12 = vector.broadcast %11 : f32 to vector<1x4x4xf32>
    %13 = arith.mulf %12, %10 : vector<1x4x4xf32>
    "tpu.trace_start"() <{level = 10 : i32, message = "bcd,bdn->bcn"}> : () -> ()
    %cst_5 = arith.constant dense<0.000000e+00> : vector<1x4x256xf32>
    %14 = tpu.matmul %13, %0, %cst_5 {dimension_numbers = #tpu.dot_dimension_numbers<[2], [1], [1], [2], [0, 0, 0, 1, 1, 2], [0], [0]>} : vector<1x4x4xf32>, vector<1x4x256xf32>, vector<1x4x256xf32> -> vector<1x4x256xf32>
    "tpu.trace_stop"() : () -> ()
    %15 = arith.addf %14, %0 : vector<1x4x256xf32>
    %c0_6 = arith.constant 0 : index
    %c0_7 = arith.constant 0 : index
    %c0_8 = arith.constant 0 : index
    %16 = vector.load %arg3[%c0_6, %c0_7, %c0_8] : memref<1x4x256xf32, #tpu.memory_space<vmem>>, vector<1x4x256xf32>
    tpu.vector_store %arg3[%c0_6, %c0_7, %c0_8], %15 {strides = array<i32>} : memref<1x4x256xf32, #tpu.memory_space<vmem>>, vector<1x4x256xf32>,
    return
  }
  func.func @transform_0(%arg0: i32) -> i32 {
    %c0_i32 = arith.constant 0 : i32
    %c0_i32_0 = arith.constant 0 : i32
    return %c0_i32 : i32
  }
  func.func @transform_1(%arg0: i32) -> (i32, i32, i32) {
    %c0_i32 = arith.constant 0 : i32
    %c0_i32_0 = arith.constant 0 : i32
    %c0_i32_1 = arith.constant 0 : i32
    return %arg0, %c0_i32, %c0_i32_0 : i32, i32, i32
  }
  func.func @transform_2(%arg0: i32) -> (i32, i32, i32) {
    %c0_i32 = arith.constant 0 : i32
    %c0_i32_0 = arith.constant 0 : i32
    %c0_i32_1 = arith.constant 0 : i32
    return %arg0, %c0_i32, %c0_i32_0 : i32, i32, i32
  }
}

</mosaic_0001>

<llo_original>
// kernel: tpu_custom_call.1
$region0: #{tpu_custom_call.1}
  #allocation0 [shape = 'u32[]', space=smem, size = 0x4, offset = 0x4, fixed_abs, tag = 'smem constant byte address 0x4 - core index']
  #allocation1 [shape = 'u32[72,128]{1,0:T(1,128)}', space=vmem, size = 0x9000, scoped, tag = 'internal scratch']
  #allocation2 [shape = 'f32[1]{0:T(128)S(6)}', space=smem, size = 0x200, scoped, tag = 'scoped memory for tpu_custom_call.1']
  %s0 = inlined_call_operand.<no memory space> [shape: f32[1], index: 0, kind: input, shape index: {}]
  %s1 = inlined_call_operand.hbm [shape: f32[2,4,256], index: 1, kind: input, shape index: {}]
  %s2 = inlined_call_operand.hbm [shape: f32[2,4,256], index: 2, kind: output, shape index: {}]
  %s3 = sld [smem:[#allocation0]]
  $region45: #{tpu_custom_call.1} parent=0
    _
  %s5 = ssub.s32 1, %s3
  %s6 = scalar_select 0, %s5, %s3
  %7 = sst [smem:[#allocation2]] %s0
  $region1: #{tpu_custom_call.1} parent=0
    #allocation3 [shape = 'u8[8192]{0}', space=vmem, size = 0x2000, scoped, tag = 'input window, operand 1']
    #allocation4 [shape = 's32[2]{0}', space=sflag, size = 0x8, scoped, tag = 'scoped memory for tpu_custom_call.1']
    #allocation5 [shape = 's32[2]{0}', space=sflag, size = 0x8, scoped, tag = 'scoped memory for tpu_custom_call.1']
    #allocation6 [shape = 'u8[8192]{0}', space=vmem, size = 0x2000, scoped, tag = 'output window, operand 0']
    %8 = vsyncpa [#allocation4], 0
    %s9 = scalar_lea.sflag [#allocation4], 1
    %10 = vsyncpa %s9, 0
    %11 = vsyncpa [#allocation5], 0
    %s12 = scalar_lea.sflag [#allocation5], 1
    %13 = vsyncpa %s12, 0
    loop: start=0, step=1, limit=4
    $region2: #{tpu_custom_call.1} parent=1 // loop_pre_header
      _
    $region3: #{tpu_custom_call.1} parent=1 // loop_header
      %s15 = sphi 0, %s19
      %p16 = scmp.ge.s32.totalorder %s15, 4
      %s23 = sphi 0, %s23
      %s25 = sphi 0, %s23
      %s26 = sphi 0, %s25
      %s40 = sphi 0, %s26
      %s46 = sphi 0, %s48
      %s49 = sphi 0, %s46
      %s50 = sphi 0, %s49
      %s66 = sphi 0, %s50
      %s72 = sphi 0, %s74
      %s75 = sphi 0, %s72
      %s76 = sphi 0, %s75
      %s92 = sphi 0, %s76
    $region4: #{tpu_custom_call.1} parent=1 // loop_header_branch
      %18 = sbr.rel (%p16) target = $region8
    $region5: #{tpu_custom_call.1} parent=1 // loop_body
      %s20 = ssub.s32 %s15, 1
      %s21 = ssub.s32 %s15, 2
      %s22 = sadd.s32 %s15, 1
      %s24 = sadd.s32 %s23, 1
      %p27 = scmp.eq.s32.totalorder %s15, 1
      %p28 = scmp.ne.s32.totalorder %s23, %s25
      %p29 = scmp.eq.s32.totalorder %s15, 0
      %p30 = por %p28, %p29
      %p31 = scmp.ne.s32.totalorder %s23, %s25
      %p32 = scmp.eq.s32.totalorder %s20, 1
      %p33 = por %p31, %p32
      %p34 = scmp.ne.s32.totalorder %s25, %s26
      %p35 = scmp.eq.s32.totalorder %s20, 0
      %p36 = por %p34, %p35
      %p37 = scmp.ne.s32.totalorder %s25, %s26
      %p38 = scmp.eq.s32.totalorder %s21, 1
      %p39 = por %p37, %p38
      %p41 = scmp.ne.s32.totalorder %s26, %s40
      %p42 = scmp.eq.s32.totalorder %s21, 0
      %p43 = por %p41, %p42
      %s44 = ssub.s32 %s15, %s22
      %p45 = scmp.eq.s32.totalorder %s44, 0
      %s47 = sadd.s32 %s46, 1
      %s48 = scalar_select %p45, %s46, %s47
      %p51 = pneg %p45
      %p52 = scmp.eq.s32.totalorder %s15, 1
      %p53 = por %p51, %p52
      %p54 = scmp.ne.s32.totalorder %s46, %s49
      %p55 = scmp.eq.s32.totalorder %s15, 0
      %p56 = por %p54, %p55
      %p57 = scmp.ne.s32.totalorder %s46, %s49
      %p58 = scmp.eq.s32.totalorder %s20, 1
      %p59 = por %p57, %p58
      %p60 = scmp.ne.s32.totalorder %s49, %s50
      %p61 = scmp.eq.s32.totalorder %s20, 0
      %p62 = por %p60, %p61
      %p63 = scmp.ne.s32.totalorder %s49, %s50
      %p64 = scmp.eq.s32.totalorder %s21, 1
      %p65 = por %p63, %p64
      %p67 = scmp.ne.s32.totalorder %s50, %s66
      %p68 = scmp.eq.s32.totalorder %s21, 0
      %p69 = por %p67, %p68
      %s70 = ssub.s32 %s15, %s22
      %p71 = scmp.eq.s32.totalorder %s70, 0
      %s73 = sadd.s32 %s72, 1
      %s74 = scalar_select %p71, %s72, %s73
      %p77 = pneg %p71
      %p78 = scmp.eq.s32.totalorder %s15, 1
      %p79 = por %p77, %p78
      %p80 = scmp.ne.s32.totalorder %s72, %s75
      %p81 = scmp.eq.s32.totalorder %s15, 0
      %p82 = por %p80, %p81
      %p83 = scmp.ne.s32.totalorder %s72, %s75
      %p84 = scmp.eq.s32.totalorder %s20, 1
      %p85 = por %p83, %p84
      %p86 = scmp.ne.s32.totalorder %s75, %s76
      %p87 = scmp.eq.s32.totalorder %s20, 0
      %p88 = por %p86, %p87
      %p89 = scmp.ne.s32.totalorder %s75, %s76
      %p90 = scmp.eq.s32.totalorder %s21, 1
      %p91 = por %p89, %p90
      %p93 = scmp.ne.s32.totalorder %s76, %s92
      %p94 = scmp.eq.s32.totalorder %s21, 0
      %p95 = por %p93, %p94
      %p96 = scmp.le.s32.totalorder 1, %s15
      %p97 = scmp.lt.s32.totalorder %s15, 3
      %p98 = pnand %p96, %p97
      %p99 = pneg %p98
      // Predicated region
      $region9: #{tpu_custom_call.1} parent=5 // pred_check
        _
      $region10: #{tpu_custom_call.1} parent=5 // pred_check_branch
        %101 = sbr.rel (%p98) target = $region12
      $region11: #{tpu_custom_call.1} parent=5 // pred_region
        %s102 = ssub.s32 %s15, 1
        // Predicated region
        $region13: #{tpu_custom_call.1} parent=11 // pred_check
          %p103 = pneg %p36
        $region14: #{tpu_custom_call.1} parent=11 // pred_check_branch
          %105 = sbr.rel (%p103) target = $region16
        $region15: #{tpu_custom_call.1} parent=11 // pred_region
          _
        $region16: #{tpu_custom_call.1} parent=11 // pred_fallthru
          _
      $region12: #{tpu_custom_call.1} parent=5 // pred_fallthru
        _
      %p106 = scmp.lt.s32.totalorder %s15, 2
      // Predicated region
      $region17: #{tpu_custom_call.1} parent=5 // pred_check
        %p107 = pneg %p106
      $region18: #{tpu_custom_call.1} parent=5 // pred_check_branch
        %109 = sbr.rel (%p107) target = $region20
      $region19: #{tpu_custom_call.1} parent=5 // pred_region
        // Predicated region
        $region21: #{tpu_custom_call.1} parent=19 // pred_check
          %p110 = pneg %p56
        $region22: #{tpu_custom_call.1} parent=19 // pred_check_branch
          %112 = sbr.rel (%p110) target = $region24
        $region23: #{tpu_custom_call.1} parent=19 // pred_region
          %s113 = sand.u32 %s46, 1
          %s114 = scalar_lea.sflag [#allocation4], %s113
          %s115 = sand.u32 %s46, 1
          %s116 = smul.addr %s115, 8
          %s117 = scalar_lea.vmem [#allocation3], %s116
          %119 = vsyncadd %s114, 0
          %s120 = smul.addr %s15, 2
          %s121 = smul.addr %s120, 4
          %s122 = scalar_lea.hbm %s1, %s121
          %s124 = sshll.u32 %s122, 4
          %s125 = int_to_ptr.hbm [resolvable:$true] %s124
          %s126 = sshll.u32 %s117, 4
          %s127 = int_to_ptr.vmem [resolvable:$true] %s126
          %129 = dma.hbm_to_vmem [thread:$0]  %s125, 128, %s127, %s114
        $region24: #{tpu_custom_call.1} parent=19 // pred_fallthru
          _
      $region20: #{tpu_custom_call.1} parent=5 // pred_fallthru
        _
      %p130 = scmp.le.s32.totalorder 1, %s15
      %p131 = scmp.lt.s32.totalorder %s15, 3
      %p132 = pnand %p130, %p131
      %p133 = pneg %p132
      // Predicated region
      $region25: #{tpu_custom_call.1} parent=5 // pred_check
        _
      $region26: #{tpu_custom_call.1} parent=5 // pred_check_branch
        %135 = sbr.rel (%p132) target = $region28
      $region27: #{tpu_custom_call.1} parent=5 // pred_region
        %s136 = ssub.s32 %s15, 1
        %s137 = sand.u32 %s49, 1
        %s138 = scalar_lea.sflag [#allocation4], %s137
        %s139 = sand.u32 %s49, 1
        %s140 = smul.addr %s139, 8
        %s141 = scalar_lea.vmem [#allocation3], %s140
        // Predicated region
        $region29: #{tpu_custom_call.1} parent=27 // pred_check
          %p142 = pneg %p62
        $region30: #{tpu_custom_call.1} parent=27 // pred_check_branch
          %144 = sbr.rel (%p142) target = $region32
        $region31: #{tpu_custom_call.1} parent=27 // pred_region
          %146 = dma.done %s138, 128
        $region32: #{tpu_custom_call.1} parent=27 // pred_fallthru
          _
        %p147 = pneg %p36
        %p148 = pneg %p33
        %s149 = sand.u32 %s49, 1
        %s150 = scalar_lea.sflag [#allocation4], %s149
        %s151 = sand.u32 %s49, 1
        %s152 = smul.addr %s151, 8
        %s153 = scalar_lea.vmem [#allocation3], %s152
        %p154 = pneg %p62
        %p155 = pneg %p59
        %p156 = pneg %p88
        %p157 = pneg %p85
        %s158 = sand.u32 %s75, 1
        %s159 = scalar_lea.sflag [#allocation5], %s158
        %s160 = sand.u32 %s75, 1
        %s161 = smul.addr %s160, 8
        %s162 = scalar_lea.vmem [#allocation6], %s161
        %v163 = vld [vmem:[%s141] sm:$0xff]
        %165 = vst [vmem:[#allocation1] ss:$2 sm:$0xff] %v163
        %v166 = vld.sshfl [vmem:[#allocation1] sm:$0xff pattern:$0x75316420]
        %v167 = vld.sshfl [vmem:[#allocation1 + $0x8] sm:$0xff pattern:$0x75316420]
        %170 = vst [vmem:[#allocation1] ss:$2 sm:$0xff] %v163
        %v171 = vld.sshfl [vmem:[#allocation1] sm:$0xff pattern:$0x75316420]
        %v172 = vld.sshfl [vmem:[#allocation1 + $0x8] sm:$0xff pattern:$0x75316420]
        %175 = vmatpush.xpose.msra.mxu0 0.0
        %176 = vmatpush.xpose.msra.mxu0 0.0
        %177 = vmatpush.xpose.msra.mxu0 0.0
        %178 = vmatpush.xpose.msra.mxu0 0.0
        %179 = vmatpush.xpose.msra.mxu0 0.0
        %180 = vmatpush.xpose.msra.mxu0 0.0
        %181 = vmatpush.xpose.msra.mxu0 0.0
        %182 = vmatpush.xpose.msra.mxu0 0.0
        %183 = vmatpush.xpose.msra.mxu0 0.0
        %184 = vmatpush.xpose.msra.mxu0 0.0
        %185 = vmatpush.xpose.msra.mxu0 0.0
        %186 = vmatpush.xpose.msra.mxu0 0.0
        %187 = vmatpush.xpose.msra.mxu0 0.0
        %188 = vmatpush.xpose.msra.mxu0 0.0
        %189 = vmatpush.xpose.msra.mxu0 0.0
        %190 = vmatpush.xpose.msra.mxu0 %v171
        %191 = vmatmul.f32.gmra.mxu0 %v166
        %v192 = vpop.f32.mrf.mxu0
        %v193 = vadd.f32 0.0, %v192
        %194 = vdwg.mxu0
        %195 = vmatpush.xpose.msra.mxu0 0.0
        %196 = vmatpush.xpose.msra.mxu0 0.0
        %197 = vmatpush.xpose.msra.mxu0 0.0
        %198 = vmatpush.xpose.msra.mxu0 0.0
        %199 = vmatpush.xpose.msra.mxu0 0.0
        %200 = vmatpush.xpose.msra.mxu0 0.0
        %201 = vmatpush.xpose.msra.mxu0 0.0
        %202 = vmatpush.xpose.msra.mxu0 0.0
        %203 = vmatpush.xpose.msra.mxu0 0.0
        %204 = vmatpush.xpose.msra.mxu0 0.0
        %205 = vmatpush.xpose.msra.mxu0 0.0
        %206 = vmatpush.xpose.msra.mxu0 0.0
        %207 = vmatpush.xpose.msra.mxu0 0.0
        %208 = vmatpush.xpose.msra.mxu0 0.0
        %209 = vmatpush.xpose.msra.mxu0 0.0
        %210 = vmatpush.xpose.msra.mxu0 %v172
        %211 = vmatmul.f32.gmra.mxu0 %v167
        %v212 = vpop.f32.mrf.mxu0
        %v213 = vadd.f32 %v193, %v212
        %214 = vdwg.mxu0
        %vm215 = vcmask 27648
        %v216 = vsel %vm215, %v213, inf
        %217 = vmin.xlane.f32.xlu0 %v216
        %v218 = vpop.xlane.xlu0 %217
        %v219 = vsub.f32 %v218, %v213
        %v220 = vmul.f32 %v219, 1.442695
        %v221 = vpow.pop %v220
        %v222 = vsel %vm215, %v221, 0.0
        %223 = vadd.xlane.f32.xlu0 %v222
        %v224 = vpop.xlane.xlu0 %223
        %v225 = vrcp.pop %v224
        %v226 = vmul.f32 %v224, %v225
        %v227 = vsub.f32 1.0, %v226
        %v228 = vmul.f32 %v225, %v227
        %v229 = vadd.f32 %v225, %v228
        %vm230 = vweird.f32 %v224
        %vm231 = vweird.f32 %v225
        %vm232 = vmor %vm230, %vm231
        %v233 = vsel %vm232, %v225, %v229
        %v234 = vand.u32 2147483647, %v224
        %vm235 = vcmp.eq.f32.partialorder %v234, 8.507059e+37
        %v236 = vand.u32 %v224, 2147483648
        %v237 = vor.u32 1.1754944e-38, %v236
        %v238 = vsel %vm235, %v237, %v233
        %v239 = vmul.f32 %v221, %v238
        %s240 = sld [smem:[#allocation2]]
        %v241 = vstv %s240
        %v242 = vmul.f32 %v241, %v239
        %243 = vst [vmem:[#allocation1] ss:$2 sm:$0xff] %v163
        %v244 = vld.sshfl [vmem:[#allocation1] sm:$0xff pattern:$0x75316420]
        %v245 = vld.sshfl [vmem:[#allocation1 + $0x8] sm:$0xff pattern:$0x75316420]
        %246 = vst [vmem:[#allocation1] ss:$2 sm:$0xff] %v163
        %v247 = vld.sshfl [vmem:[#allocation1] sm:$0xff pattern:$0x75316420]
        %v248 = vld.sshfl [vmem:[#allocation1 + $0x8] sm:$0xff pattern:$0x75316420]
        %vm251 = vcmask 31744
        %v253 = vsel %vm251, %v242, 0
        %vm255 = vcmask 1043456
        %v256 = vsel %vm255, %v244, 0
        %v258 = vsel %vm255, %v245, 0
        %260 = vmatpush.msra.mxu0 0.0
        %261 = vmatpush.msra.mxu0 0.0
        %262 = vmatpush.msra.mxu0 0.0
        %263 = vmatpush.msra.mxu0 0.0
        %264 = vmatpush.msra.mxu0 0.0
        %265 = vmatpush.msra.mxu0 0.0
        %266 = vmatpush.msra.mxu0 0.0
        %267 = vmatpush.msra.mxu0 0.0
        %268 = vmatpush.msra.mxu0 0.0
        %269 = vmatpush.msra.mxu0 0.0
        %270 = vmatpush.msra.mxu0 0.0
        %271 = vmatpush.msra.mxu0 0.0
        %272 = vmatpush.msra.mxu0 0.0
        %273 = vmatpush.msra.mxu0 0.0
        %274 = vmatpush.msra.mxu0 0.0
        %275 = vmatpush.msra.mxu0 %v256
        %276 = vmatmul.f32.gmra.mxu0 %v253
        %v277 = vpop.f32.mrf.mxu0
        %v278 = vadd.f32 %v247, %v277
        %279 = vdwg.mxu0
        %280 = vmatpush.msra.mxu0 0.0
        %281 = vmatpush.msra.mxu0 0.0
        %282 = vmatpush.msra.mxu0 0.0
        %283 = vmatpush.msra.mxu0 0.0
        %284 = vmatpush.msra.mxu0 0.0
        %285 = vmatpush.msra.mxu0 0.0
        %286 = vmatpush.msra.mxu0 0.0
        %287 = vmatpush.msra.mxu0 0.0
        %288 = vmatpush.msra.mxu0 0.0
        %289 = vmatpush.msra.mxu0 0.0
        %290 = vmatpush.msra.mxu0 0.0
        %291 = vmatpush.msra.mxu0 0.0
        %292 = vmatpush.msra.mxu0 0.0
        %293 = vmatpush.msra.mxu0 0.0
        %294 = vmatpush.msra.mxu0 0.0
        %295 = vmatpush.msra.mxu0 %v258
        %296 = vmatmul.f32.gmra.mxu0 %v253
        %v297 = vpop.f32.mrf.mxu0
        %v298 = vadd.f32 %v248, %v297
        %299 = vdwg.mxu0
        %v302 = vrot.slane %v298, 4
        %v303 = vsel %vm255, %v278, %v302
        %305 = vst [vmem:[%s162] sm:$0xff] %v303
        %s306 = sand.u32 %s75, 1
        %s307 = scalar_lea.sflag [#allocation5], %s306
        %s308 = sand.u32 %s75, 1
        %s309 = smul.addr %s308, 8
        %s310 = scalar_lea.vmem [#allocation6], %s309
        // Predicated region
        $region33: #{tpu_custom_call.1} parent=27 // pred_check
          %p311 = pneg %p85
        $region34: #{tpu_custom_call.1} parent=27 // pred_check_branch
          %313 = sbr.rel (%p311) target = $region36
        $region35: #{tpu_custom_call.1} parent=27 // pred_region
          %315 = vsyncadd %s307, 0
          %s316 = smul.addr %s20, 2
          %s317 = smul.addr %s316, 4
          %s318 = scalar_lea.hbm %s2, %s317
          %s320 = sshll.u32 %s310, 4
          %s321 = int_to_ptr.vmem [resolvable:$true] %s320
          %s322 = sshll.u32 %s318, 4
          %s323 = int_to_ptr.hbm [resolvable:$true] %s322
          %325 = dma.vmem_to_hbm [thread:$0]  %s321, 128, %s323, %s307
        $region36: #{tpu_custom_call.1} parent=27 // pred_fallthru
          _
      $region28: #{tpu_custom_call.1} parent=5 // pred_fallthru
        _
      %p326 = scmp.le.s32.totalorder 2, %s15
      // Predicated region
      $region37: #{tpu_custom_call.1} parent=5 // pred_check
        %p327 = pneg %p326
      $region38: #{tpu_custom_call.1} parent=5 // pred_check_branch
        %329 = sbr.rel (%p327) target = $region40
      $region39: #{tpu_custom_call.1} parent=5 // pred_region
        %s330 = ssub.s32 %s15, 2
        // Predicated region
        $region41: #{tpu_custom_call.1} parent=39 // pred_check
          %p331 = pneg %p91
        $region42: #{tpu_custom_call.1} parent=39 // pred_check_branch
          %333 = sbr.rel (%p331) target = $region44
        $region43: #{tpu_custom_call.1} parent=39 // pred_region
          %s334 = sand.u32 %s76, 1
          %s335 = scalar_lea.sflag [#allocation5], %s334
          %s336 = sand.u32 %s76, 1
          %s337 = smul.addr %s336, 8
          %s338 = scalar_lea.vmem [#allocation6], %s337
          %340 = dma.done %s335, 128
        $region44: #{tpu_custom_call.1} parent=39 // pred_fallthru
          _
      $region40: #{tpu_custom_call.1} parent=5 // pred_fallthru
        _
    $region6: #{tpu_custom_call.1} parent=1 // loop_footer
      %s19 = sadd.s32 1, %s15
    $region7: #{tpu_custom_call.1} parent=1 // loop_footer_branch
      %14 = sbr.rel target = $region3
    $region8: #{tpu_custom_call.1} parent=1 // loop_exit
      _
    %341 = vsyncpa [#allocation4], 1
    %s342 = scalar_lea.sflag [#allocation4], 1
    %343 = vsyncpa %s342, 1
    %344 = vsyncpa [#allocation5], 1
    %s345 = scalar_lea.sflag [#allocation5], 1
    %346 = vsyncpa %s345, 1

</llo_original>
